<compile_context>
chip_gen: v6e
topology: v6e:2x2x1
jax: 0.10.0
libtpu: 0.0.40
codegen_flags: <defaults>
</compile_context>

<pallas_src>
import functools

import jax
import jax.numpy as jnp
from jax.experimental import pallas as pl
from jax.experimental.pallas import tpu as pltpu


# --------------------------------------------------------------------------
# Tile-size helper: full extent if it fits under the cap, otherwise the
# largest `align`-multiple divisor <= cap; full extent as a last resort.
# --------------------------------------------------------------------------
def _pick_tile(dim, cap, align):
    if dim <= cap:
        return dim
    d = cap - (cap % align)
    while d >= align:
        if dim % d == 0:
            return d
        d -= align
    return dim


# --------------------------------------------------------------------------
# Fused MLP kernel: all (pre-transposed) weights resident in VMEM.
# Grid is 1-D over batch tiles only; intermediates stay on-chip.
# --------------------------------------------------------------------------
def _fused_mlp_kernel(x_ref, *rest):
    *w_refs, o_ref = rest
    h = x_ref[...]
    for w_ref in w_refs:
        # (tm, k) @ (k, n) — standard MXU contraction, f32 accumulation.
        h = jnp.dot(h, w_ref[...], preferred_element_type=jnp.float32)
    o_ref[...] = h.astype(o_ref.dtype)


def _fused_vmem_bytes(tm, k_in, wt_shapes, itemsize=4):
    # double-buffered x/out tiles + weights + on-chip intermediate activations
    n_out = wt_shapes[-1][1]
    acts = sum(tm * n for _, n in wt_shapes)
    return itemsize * (2 * tm * k_in + 2 * tm * n_out +
                       2 * sum(k * n for k, n in wt_shapes) + acts)


def fused_mlp(x, weights_t):
    """One pallas_call computing x @ Wt0 @ Wt1 @ ... (Wt_i already (in, out))."""
    M, K = x.shape
    n_out = weights_t[-1].shape[1]
    tm = _pick_tile(M, 512, 8)
    grid = (pl.cdiv(M, tm),)

    est = _fused_vmem_bytes(tm, K, [w.shape for w in weights_t])
    vmem_limit = int(min(max(est + (8 << 20), 32 << 20), 60 << 20))

    in_specs = [pl.BlockSpec((tm, K), lambda i: (i, 0))]
    for wt in weights_t:
        in_specs.append(pl.BlockSpec(tuple(wt.shape), lambda i: (0, 0)))

    return pl.pallas_call(
        _fused_mlp_kernel,
        out_shape=jax.ShapeDtypeStruct((M, n_out), x.dtype),
        grid_spec=pltpu.PrefetchScalarGridSpec(
            num_scalar_prefetch=0,
            grid=grid,
            in_specs=in_specs,
            out_specs=pl.BlockSpec((tm, n_out), lambda i: (i, 0)),
        ),
        compiler_params=pltpu.CompilerParams(
            dimension_semantics=("parallel",),
            vmem_limit_bytes=vmem_limit),
    )(x, *weights_t)


# --------------------------------------------------------------------------
# Per-layer tiled fallback (only used when fused weights would not fit VMEM).
# Weight already pre-transposed to (K, N); accumulate directly into o_ref.
# --------------------------------------------------------------------------
def _linear_kernel(x_ref, wt_ref, o_ref):
    k = pl.program_id(2)
    partial = jnp.dot(x_ref[...], wt_ref[...], preferred_element_type=jnp.float32)

    @pl.when(k == 0)
    def _():
        o_ref[...] = partial.astype(o_ref.dtype)   # direct store, no zero-init

    @pl.when(k > 0)
    def _():
        o_ref[...] = (o_ref[...].astype(jnp.float32) + partial).astype(o_ref.dtype)


def linear_no_bias(x, w_t):
    """y = x @ w_t  (w_t is (in_features, out_features))."""
    M, K = x.shape
    K2, N = w_t.shape
    assert K == K2, f"shape mismatch: x {x.shape} vs w_t {w_t.shape}"

    tm = _pick_tile(M, 512, 8)
    tn = _pick_tile(N, 512, 128)
    tk = _pick_tile(K, 1024, 128)
    grid = (M // tm, N // tn, K // tk)

    est = 2 * 4 * (tm * tk + tk * tn + tm * tn)
    vmem_limit = int(min(max(est + (8 << 20), 32 << 20), 60 << 20))

    return pl.pallas_call(
        _linear_kernel,
        out_shape=jax.ShapeDtypeStruct((M, N), x.dtype),
        grid_spec=pltpu.PrefetchScalarGridSpec(
            num_scalar_prefetch=0,
            grid=grid,
            in_specs=[
                pl.BlockSpec((tm, tk), lambda i, j, k: (i, k)),
                pl.BlockSpec((tk, tn), lambda i, j, k: (k, j)),
            ],
            out_specs=pl.BlockSpec((tm, tn), lambda i, j, k: (i, j)),
        ),
        compiler_params=pltpu.CompilerParams(
            dimension_semantics=("parallel", "parallel", "arbitrary"),
            vmem_limit_bytes=vmem_limit),
    )(x, w_t)


# --------------------------------------------------------------------------
# Forward pass of the stacked bias-free Linear layers (the PyTorch `model`).
# --------------------------------------------------------------------------
_FUSED_VMEM_BUDGET = 40 << 20  # conservative for v7x (64 MiB physical VMEM)


@jax.jit
def mlp_forward(x, weights):
    # Pre-transpose PyTorch-layout weights (out, in) -> (in, out) once.
    weights_t = tuple(jnp.transpose(w) for w in weights)

    M, K = x.shape
    tm = _pick_tile(M, 512, 8)
    if _fused_vmem_bytes(tm, K, [w.shape for w in weights_t]) <= _FUSED_VMEM_BUDGET:
        return fused_mlp(x, weights_t)

    # Fallback: one tiled pallas_call per layer (still no scratch accumulator).
    y = x
    for wt in weights_t:
        y = linear_no_bias(y, wt)
    return y


def make_weights(key, layer_dims):
    """Deterministic weights shaped like the PyTorch module:
    layer i maps layer_dims[i] -> layer_dims[i+1], stored as (out, in)."""
    weights = []
    for i in range(len(layer_dims) - 1):
        key, sub = jax.random.split(key)
        fan_in, fan_out = layer_dims[i], layer_dims[i + 1]
        w = jax.random.normal(sub, (fan_out, fan_in), dtype=jnp.float32)
        w = w / jnp.sqrt(jnp.float32(fan_in))
        weights.append(w)
    return tuple(weights)


if __name__ == "__main__":
    key = jax.random.PRNGKey(0)
    batch = 8
    layer_dims = [32, 64, 32, 16]   # 3 bias-free Linear layers

    kx, kw = jax.random.split(key)
    x = jax.random.normal(kx, (batch, layer_dims[0]), dtype=jnp.float32)
    weights = make_weights(kw, layer_dims)

    # Fused path (the one the forward pass uses at these sizes).
    y = jax.block_until_ready(mlp_forward(x, weights))

    # Reference in plain JAX (same math: chained x @ W.T).
    y_ref = x
    for w in weights:
        y_ref = y_ref @ w.T
    assert y.shape == (batch, layer_dims[-1])
    assert jnp.allclose(y, y_ref, atol=1e-4, rtol=1e-4)

    # Also exercise the tiled per-layer fallback path explicitly.
    y2 = x
    for w in weights:
        y2 = linear_no_bias(y2, jnp.transpose(w))
    y2 = jax.block_until_ready(y2)
    assert jnp.allclose(y2, y_ref, atol=1e-4, rtol=1e-4)

    print("KERNEL_OK")
</pallas_src>

<mosaic_0001>
module attributes {stable_mosaic.version = 11 : i64} {
  func.func @_fused_mlp_kernel(%arg0: i32, %arg1: memref<8x32xf32, #tpu.memory_space<vmem>>, %arg2: memref<32x64xf32, #tpu.memory_space<vmem>>, %arg3: memref<64x32xf32, #tpu.memory_space<vmem>>, %arg4: memref<32x16xf32, #tpu.memory_space<vmem>>, %arg5: memref<8x16xf32, #tpu.memory_space<vmem>>) attributes {dimension_semantics = [#tpu.dimension_semantics<parallel>], iteration_bounds = array<i64: 1>, scalar_prefetch = 0 : i64, scratch_operands = 0 : i64, tpu.core_type = #tpu.core_type<tc>, window_params = [{transform_indices = @transform_0, window_bounds = array<i64: 8, 32>}, {pipeline_mode = #tpu.pipeline_mode<synchronous>, transform_indices = @transform_1, window_bounds = array<i64: 32, 64>}, {pipeline_mode = #tpu.pipeline_mode<synchronous>, transform_indices = @transform_2, window_bounds = array<i64: 64, 32>}, {pipeline_mode = #tpu.pipeline_mode<synchronous>, transform_indices = @transform_3, window_bounds = array<i64: 32, 16>}, {transform_indices = @transform_4, window_bounds = array<i64: 8, 16>}]} {
    %c0 = arith.constant 0 : index
    %c0_0 = arith.constant 0 : index
    %0 = vector.load %arg1[%c0, %c0_0] : memref<8x32xf32, #tpu.memory_space<vmem>>, vector<8x32xf32>
    %c0_1 = arith.constant 0 : index
    %c0_2 = arith.constant 0 : index
    %1 = vector.load %arg2[%c0_1, %c0_2] : memref<32x64xf32, #tpu.memory_space<vmem>>, vector<32x64xf32>
    %cst = arith.constant dense<0.000000e+00> : vector<8x64xf32>
    %2 = tpu.matmul %0, %1, %cst {dimension_numbers = #tpu.dot_dimension_numbers<[1], [0], [0], [1], [0, 0, 1, 1], [], []>} : vector<8x32xf32>, vector<32x64xf32>, vector<8x64xf32> -> vector<8x64xf32>
    %c0_3 = arith.constant 0 : index
    %c0_4 = arith.constant 0 : index
    %3 = vector.load %arg3[%c0_3, %c0_4] : memref<64x32xf32, #tpu.memory_space<vmem>>, vector<64x32xf32>
    %cst_5 = arith.constant dense<0.000000e+00> : vector<8x32xf32>
    %4 = tpu.matmul %2, %3, %cst_5 {dimension_numbers = #tpu.dot_dimension_numbers<[1], [0], [0], [1], [0, 0, 1, 1], [], []>} : vector<8x64xf32>, vector<64x32xf32>, vector<8x32xf32> -> vector<8x32xf32>
    %c0_6 = arith.constant 0 : index
    %c0_7 = arith.constant 0 : index
    %5 = vector.load %arg4[%c0_6, %c0_7] : memref<32x16xf32, #tpu.memory_space<vmem>>, vector<32x16xf32>
    %cst_8 = arith.constant dense<0.000000e+00> : vector<8x16xf32>
    %6 = tpu.matmul %4, %5, %cst_8 {dimension_numbers = #tpu.dot_dimension_numbers<[1], [0], [0], [1], [0, 0, 1, 1], [], []>} : vector<8x32xf32>, vector<32x16xf32>, vector<8x16xf32> -> vector<8x16xf32>
    %c0_9 = arith.constant 0 : index
    %c0_10 = arith.constant 0 : index
    %7 = vector.load %arg5[%c0_9, %c0_10] : memref<8x16xf32, #tpu.memory_space<vmem>>, vector<8x16xf32>
    tpu.vector_store %arg5[%c0_9, %c0_10], %6 {strides = array<i32>} : memref<8x16xf32, #tpu.memory_space<vmem>>, vector<8x16xf32>,
    return
  }
  func.func @transform_0(%arg0: i32) -> (i32, i32) {
    %c0_i32 = arith.constant 0 : i32
    %c0_i32_0 = arith.constant 0 : i32
    return %arg0, %c0_i32 : i32, i32
  }
  func.func @transform_1(%arg0: i32) -> (i32, i32) {
    %c0_i32 = arith.constant 0 : i32
    %c0_i32_0 = arith.constant 0 : i32
    %c0_i32_1 = arith.constant 0 : i32
    return %c0_i32, %c0_i32_0 : i32, i32
  }
  func.func @transform_2(%arg0: i32) -> (i32, i32) {
    %c0_i32 = arith.constant 0 : i32
    %c0_i32_0 = arith.constant 0 : i32
    %c0_i32_1 = arith.constant 0 : i32
    return %c0_i32, %c0_i32_0 : i32, i32
  }
  func.func @transform_3(%arg0: i32) -> (i32, i32) {
    %c0_i32 = arith.constant 0 : i32
    %c0_i32_0 = arith.constant 0 : i32
    %c0_i32_1 = arith.constant 0 : i32
    return %c0_i32, %c0_i32_0 : i32, i32
  }
  func.func @transform_4(%arg0: i32) -> (i32, i32) {
    %c0_i32 = arith.constant 0 : i32
    %c0_i32_0 = arith.constant 0 : i32
    return %arg0, %c0_i32 : i32, i32
  }
}

</mosaic_0001>

<llo_original>
// kernel: mlp_forward.1
$region0: #{mlp_forward.1}
  #allocation0 [shape = 'u32[]', space=smem, size = 0x4, offset = 0x4, fixed_abs, tag = 'smem constant byte address 0x4 - core index']
  #allocation1 [shape = 'u32[144,128]{1,0:T(1,128)}', space=vmem, size = 0x12000, scoped, tag = 'internal scratch']
  %s0 = inlined_call_operand.vmem [shape: f32[8,32], index: 0, kind: input, shape index: {}]
  %s1 = inlined_call_operand.vmem [shape: f32[32,64], index: 1, kind: input, shape index: {}]
  %s2 = inlined_call_operand.vmem [shape: f32[64,32], index: 2, kind: input, shape index: {}]
  %s3 = inlined_call_operand.vmem [shape: f32[32,16], index: 3, kind: input, shape index: {}]
  %s4 = inlined_call_operand.hbm [shape: f32[8,16], index: 4, kind: output, shape index: {}]
  %s5 = sld [smem:[#allocation0]]
  $region26: #{mlp_forward.1} parent=0
    _
  %s7 = ssub.s32 1, %s5
  %s8 = scalar_select 0, %s7, %s5
  $region1: #{mlp_forward.1} parent=0
    #allocation2 [shape = 'u8[4096]{0}', space=vmem, size = 0x1000, scoped, tag = 'output window, operand 0, single buffered']
    #allocation3 [shape = 's32[1]{0}', space=sflag, size = 0x4, scoped, tag = 'scoped memory for mlp_forward.1']
    %9 = vsyncpa [#allocation3], 0
    // Predicated region
    $region2: #{mlp_forward.1} parent=1 // pred_check
      _
    $region3: #{mlp_forward.1} parent=1 // pred_check_branch
      %11 = sbr.rel (0) target = $region5
    $region4: #{mlp_forward.1} parent=1 // pred_region
      _
    $region5: #{mlp_forward.1} parent=1 // pred_fallthru
      _
    // Predicated region
    $region6: #{mlp_forward.1} parent=1 // pred_check
      _
    $region7: #{mlp_forward.1} parent=1 // pred_check_branch
      %13 = sbr.rel (0) target = $region9
    $region8: #{mlp_forward.1} parent=1 // pred_region
      _
    $region9: #{mlp_forward.1} parent=1 // pred_fallthru
      _
    // Predicated region
    $region10: #{mlp_forward.1} parent=1 // pred_check
      _
    $region11: #{mlp_forward.1} parent=1 // pred_check_branch
      %15 = sbr.rel (0) target = $region13
    $region12: #{mlp_forward.1} parent=1 // pred_region
      _
    $region13: #{mlp_forward.1} parent=1 // pred_fallthru
      _
    // Predicated region
    $region14: #{mlp_forward.1} parent=1 // pred_check
      _
    $region15: #{mlp_forward.1} parent=1 // pred_check_branch
      %17 = sbr.rel (0) target = $region17
    $region16: #{mlp_forward.1} parent=1 // pred_region
      _
    $region17: #{mlp_forward.1} parent=1 // pred_fallthru
      _
    %v18 = vld [vmem:[%s0] sm:$0xff]
    %v19 = vld [vmem:[%s1] sm:$0xff]
    %v20 = vld [vmem:[%s1 + $0x8] sm:$0xff]
    %v21 = vld [vmem:[%s1 + $0x10] sm:$0xff]
    %v22 = vld [vmem:[%s1 + $0x18] sm:$0xff]
    %vm23 = vcmask 261120
    %v25 = vsel %vm23, %v18, 0
    %27 = vmatprep.subr.mxu0 0.0
    %28 = vmatpush1.msra.mxu0 0.0
    %29 = vmatprep.subr.mxu0 0.0
    %30 = vmatpush1.msra.mxu0 0.0
    %31 = vmatprep.subr.mxu0 0.0
    %32 = vmatpush1.msra.mxu0 0.0
    %33 = vmatprep.subr.mxu0 0.0
    %34 = vmatpush1.msra.mxu0 0.0
    %35 = vmatprep.subr.mxu0 0.0
    %36 = vmatpush1.msra.mxu0 0.0
    %37 = vmatprep.subr.mxu0 0.0
    %38 = vmatpush1.msra.mxu0 0.0
    %39 = vmatprep.subr.mxu0 0.0
    %40 = vmatpush1.msra.mxu0 0.0
    %41 = vmatprep.subr.mxu0 0.0
    %42 = vmatpush1.msra.mxu0 0.0
    %43 = vmatprep.subr.mxu0 0.0
    %44 = vmatpush1.msra.mxu0 0.0
    %45 = vmatprep.subr.mxu0 0.0
    %46 = vmatpush1.msra.mxu0 0.0
    %47 = vmatprep.subr.mxu0 0.0
    %48 = vmatpush1.msra.mxu0 0.0
    %49 = vmatprep.subr.mxu0 0.0
    %50 = vmatpush1.msra.mxu0 0.0
    %51 = vmatprep.subr.mxu0 0.0
    %52 = vmatpush1.msra.mxu0 %v22
    %53 = vmatprep.subr.mxu0 0.0
    %54 = vmatpush1.msra.mxu0 %v21
    %55 = vmatprep.subr.mxu0 0.0
    %56 = vmatpush1.msra.mxu0 %v20
    %57 = vmatprep.subr.mxu0 0.0
    %58 = vmatpush1.msra.mxu0 %v19
    %59 = vmatprep.subr.mxu0 0.0
    %60 = vmatpush2.msra.mxu0 0.0
    %61 = vmatprep.subr.mxu0 0.0
    %62 = vmatpush2.msra.mxu0 0.0
    %63 = vmatprep.subr.mxu0 0.0
    %64 = vmatpush2.msra.mxu0 0.0
    %65 = vmatprep.subr.mxu0 0.0
    %66 = vmatpush2.msra.mxu0 0.0
    %67 = vmatprep.subr.mxu0 0.0
    %68 = vmatpush2.msra.mxu0 0.0
    %69 = vmatprep.subr.mxu0 0.0
    %70 = vmatpush2.msra.mxu0 0.0
    %71 = vmatprep.subr.mxu0 0.0
    %72 = vmatpush2.msra.mxu0 0.0
    %73 = vmatprep.subr.mxu0 0.0
    %74 = vmatpush2.msra.mxu0 0.0
    %75 = vmatprep.subr.mxu0 0.0
    %76 = vmatpush2.msra.mxu0 0.0
    %77 = vmatprep.subr.mxu0 0.0
    %78 = vmatpush2.msra.mxu0 0.0
    %79 = vmatprep.subr.mxu0 0.0
    %80 = vmatpush2.msra.mxu0 0.0
    %81 = vmatprep.subr.mxu0 0.0
    %82 = vmatpush2.msra.mxu0 0.0
    %83 = vmatprep.subr.mxu0 0.0
    %84 = vmatpush2.msra.mxu0 0.0
    %85 = vmatprep.subr.mxu0 0.0
    %86 = vmatpush2.msra.mxu0 0.0
    %87 = vmatprep.subr.mxu0 0.0
    %88 = vmatpush2.msra.mxu0 0.0
    %89 = vmatprep.subr.mxu0 0.0
    %90 = vmatpush2.msra.mxu0 0.0
    %91 = vmatprep.mubr.f32.mxu0 0.0
    %92 = vmatmul.mubr.f32.gmra.mxu0 %v25
    %v93 = vpop.f32.mrf.mxu0
    %v94 = vadd.f32 0.0, %v93
    %v95 = vpop.f32.mrf.mxu0
    %96 = vdwg.mxu0
    %v97 = vld [vmem:[%s2] sm:$0xff]
    %v98 = vld [vmem:[%s2 + $0x8] sm:$0xff]
    %v99 = vld [vmem:[%s2 + $0x10] sm:$0xff]
    %v100 = vld [vmem:[%s2 + $0x18] sm:$0xff]
    %v101 = vld [vmem:[%s2 + $0x20] sm:$0xff]
    %v102 = vld [vmem:[%s2 + $0x28] sm:$0xff]
    %v103 = vld [vmem:[%s2 + $0x30] sm:$0xff]
    %v104 = vld [vmem:[%s2 + $0x38] sm:$0xff]
    %vm105 = vcmask 523264
    %v107 = vsel %vm105, %v94, 0
    %109 = vmatprep.subr.mxu0 0.0
    %110 = vmatpush1.msra.mxu0 0.0
    %111 = vmatprep.subr.mxu0 0.0
    %112 = vmatpush1.msra.mxu0 0.0
    %113 = vmatprep.subr.mxu0 0.0
    %114 = vmatpush1.msra.mxu0 0.0
    %115 = vmatprep.subr.mxu0 0.0
    %116 = vmatpush1.msra.mxu0 0.0
    %117 = vmatprep.subr.mxu0 0.0
    %118 = vmatpush1.msra.mxu0 0.0
    %119 = vmatprep.subr.mxu0 0.0
    %120 = vmatpush1.msra.mxu0 0.0
    %121 = vmatprep.subr.mxu0 0.0
    %122 = vmatpush1.msra.mxu0 0.0
    %123 = vmatprep.subr.mxu0 0.0
    %124 = vmatpush1.msra.mxu0 0.0
    %125 = vmatprep.subr.mxu0 0.0
    %126 = vmatpush1.msra.mxu0 %v104
    %127 = vmatprep.subr.mxu0 0.0
    %128 = vmatpush1.msra.mxu0 %v103
    %129 = vmatprep.subr.mxu0 0.0
    %130 = vmatpush1.msra.mxu0 %v102
    %131 = vmatprep.subr.mxu0 0.0
    %132 = vmatpush1.msra.mxu0 %v101
    %133 = vmatprep.subr.mxu0 0.0
    %134 = vmatpush1.msra.mxu0 %v100
    %135 = vmatprep.subr.mxu0 0.0
    %136 = vmatpush1.msra.mxu0 %v99
    %137 = vmatprep.subr.mxu0 0.0
    %138 = vmatpush1.msra.mxu0 %v98
    %139 = vmatprep.subr.mxu0 0.0
    %140 = vmatpush1.msra.mxu0 %v97
    %141 = vmatprep.subr.mxu0 0.0
    %142 = vmatpush2.msra.mxu0 0.0
    %143 = vmatprep.subr.mxu0 0.0
    %144 = vmatpush2.msra.mxu0 0.0
    %145 = vmatprep.subr.mxu0 0.0
    %146 = vmatpush2.msra.mxu0 0.0
    %147 = vmatprep.subr.mxu0 0.0
    %148 = vmatpush2.msra.mxu0 0.0
    %149 = vmatprep.subr.mxu0 0.0
    %150 = vmatpush2.msra.mxu0 0.0
    %151 = vmatprep.subr.mxu0 0.0
    %152 = vmatpush2.msra.mxu0 0.0
    %153 = vmatprep.subr.mxu0 0.0
    %154 = vmatpush2.msra.mxu0 0.0
    %155 = vmatprep.subr.mxu0 0.0
    %156 = vmatpush2.msra.mxu0 0.0
    %157 = vmatprep.subr.mxu0 0.0
    %158 = vmatpush2.msra.mxu0 0.0
    %159 = vmatprep.subr.mxu0 0.0
    %160 = vmatpush2.msra.mxu0 0.0
    %161 = vmatprep.subr.mxu0 0.0
    %162 = vmatpush2.msra.mxu0 0.0
    %163 = vmatprep.subr.mxu0 0.0
    %164 = vmatpush2.msra.mxu0 0.0
    %165 = vmatprep.subr.mxu0 0.0
    %166 = vmatpush2.msra.mxu0 0.0
    %167 = vmatprep.subr.mxu0 0.0
    %168 = vmatpush2.msra.mxu0 0.0
    %169 = vmatprep.subr.mxu0 0.0
    %170 = vmatpush2.msra.mxu0 0.0
    %171 = vmatprep.subr.mxu0 0.0
    %172 = vmatpush2.msra.mxu0 0.0
    %173 = vmatprep.mubr.f32.mxu0 0.0
    %174 = vmatmul.mubr.f32.gmra.mxu0 %v107
    %v175 = vpop.f32.mrf.mxu0
    %v176 = vadd.f32 0.0, %v175
    %v177 = vpop.f32.mrf.mxu0
    %178 = vdwg.mxu0
    %v179 = vld [vmem:[%s3] sm:$0xff]
    %v180 = vld [vmem:[%s3 + $0x8] sm:$0xff]
    %v181 = vld [vmem:[%s3 + $0x10] sm:$0xff]
    %v182 = vld [vmem:[%s3 + $0x18] sm:$0xff]
    %v184 = vsel %vm23, %v176, 0
    %186 = vmatprep.subr.mxu0 0.0
    %187 = vmatpush1.msra.mxu0 0.0
    %188 = vmatprep.subr.mxu0 0.0
    %189 = vmatpush1.msra.mxu0 0.0
    %190 = vmatprep.subr.mxu0 0.0
    %191 = vmatpush1.msra.mxu0 0.0
    %192 = vmatprep.subr.mxu0 0.0
    %193 = vmatpush1.msra.mxu0 0.0
    %194 = vmatprep.subr.mxu0 0.0
    %195 = vmatpush1.msra.mxu0 0.0
    %196 = vmatprep.subr.mxu0 0.0
    %197 = vmatpush1.msra.mxu0 0.0
    %198 = vmatprep.subr.mxu0 0.0
    %199 = vmatpush1.msra.mxu0 0.0
    %200 = vmatprep.subr.mxu0 0.0
    %201 = vmatpush1.msra.mxu0 0.0
    %202 = vmatprep.subr.mxu0 0.0
    %203 = vmatpush1.msra.mxu0 0.0
    %204 = vmatprep.subr.mxu0 0.0
    %205 = vmatpush1.msra.mxu0 0.0
    %206 = vmatprep.subr.mxu0 0.0
    %207 = vmatpush1.msra.mxu0 0.0
    %208 = vmatprep.subr.mxu0 0.0
    %209 = vmatpush1.msra.mxu0 0.0
    %210 = vmatprep.subr.mxu0 0.0
    %211 = vmatpush1.msra.mxu0 %v182
    %212 = vmatprep.subr.mxu0 0.0
    %213 = vmatpush1.msra.mxu0 %v181
    %214 = vmatprep.subr.mxu0 0.0
    %215 = vmatpush1.msra.mxu0 %v180
    %216 = vmatprep.subr.mxu0 0.0
    %217 = vmatpush1.msra.mxu0 %v179
    %218 = vmatprep.subr.mxu0 0.0
    %219 = vmatpush2.msra.mxu0 0.0
    %220 = vmatprep.subr.mxu0 0.0
    %221 = vmatpush2.msra.mxu0 0.0
    %222 = vmatprep.subr.mxu0 0.0
    %223 = vmatpush2.msra.mxu0 0.0
    %224 = vmatprep.subr.mxu0 0.0
    %225 = vmatpush2.msra.mxu0 0.0
    %226 = vmatprep.subr.mxu0 0.0
    %227 = vmatpush2.msra.mxu0 0.0
    %228 = vmatprep.subr.mxu0 0.0
    %229 = vmatpush2.msra.mxu0 0.0
    %230 = vmatprep.subr.mxu0 0.0
    %231 = vmatpush2.msra.mxu0 0.0
    %232 = vmatprep.subr.mxu0 0.0
    %233 = vmatpush2.msra.mxu0 0.0
    %234 = vmatprep.subr.mxu0 0.0
    %235 = vmatpush2.msra.mxu0 0.0
    %236 = vmatprep.subr.mxu0 0.0
    %237 = vmatpush2.msra.mxu0 0.0
    %238 = vmatprep.subr.mxu0 0.0
    %239 = vmatpush2.msra.mxu0 0.0
    %240 = vmatprep.subr.mxu0 0.0
    %241 = vmatpush2.msra.mxu0 0.0
    %242 = vmatprep.subr.mxu0 0.0
    %243 = vmatpush2.msra.mxu0 0.0
    %244 = vmatprep.subr.mxu0 0.0
    %245 = vmatpush2.msra.mxu0 0.0
    %246 = vmatprep.subr.mxu0 0.0
    %247 = vmatpush2.msra.mxu0 0.0
    %248 = vmatprep.subr.mxu0 0.0
    %249 = vmatpush2.msra.mxu0 0.0
    %250 = vmatprep.mubr.f32.mxu0 0.0
    %251 = vmatmul.mubr.f32.gmra.mxu0 %v184
    %v252 = vpop.f32.mrf.mxu0
    %v253 = vadd.f32 0.0, %v252
    %v254 = vpop.f32.mrf.mxu0
    %255 = vdwg.mxu0
    %vm256 = vcmask 130048
    %257 = vst.msk [vmem:[#allocation2] sm:$0xff] %vm256, %v253
    // Predicated region
    $region18: #{mlp_forward.1} parent=1 // pred_check
      _
    $region19: #{mlp_forward.1} parent=1 // pred_check_branch
      %259 = sbr.rel (0) target = $region21
    $region20: #{mlp_forward.1} parent=1 // pred_region
      %s261 = ssub.s32 128, 128
      %262 = vsyncadd [#allocation3], %s261
      %s264 = sshll.u32 [#allocation2], 4
      %s265 = int_to_ptr.vmem [resolvable:$true] %s264
      %267 = dma.vmem_to_hbm [thread:$0]  %s265, 128, %s4, [#allocation3]
    $region21: #{mlp_forward.1} parent=1 // pred_fallthru
      _
    // Predicated region
    $region22: #{mlp_forward.1} parent=1 // pred_check
      _
    $region23: #{mlp_forward.1} parent=1 // pred_check_branch
      %269 = sbr.rel (0) target = $region25
    $region24: #{mlp_forward.1} parent=1 // pred_region
      %270 = dma.done [#allocation3], 128
    $region25: #{mlp_forward.1} parent=1 // pred_fallthru
      _
    %271 = vsyncpa [#allocation3], 1

</llo_original>
